<compile_context>
chip_gen: v7x
topology: tpu7x:2x2x1
jax: 0.10.0
libtpu: 0.0.40
codegen_flags: <defaults>
</compile_context>

<pallas_src>
import jax
import jax.numpy as jnp
from jax import lax
from jax.experimental import pallas as pl
from jax.experimental.pallas import tpu as pltpu

HIDDEN_DIM = 10
LANES = 128


def _make_kernel(signs, strip_rows, n_strips):
    """Build a RegressioNet kernel specialized to the (static) signs of w2."""
    H = len(signs)

    def kernel(params_ref, x_ref, o_ref):
        # params_ref: SMEM f32[2H+1] = [a(H) | c(H) | b2], with a = w2*w1, c = w2*b1.
        a = [params_ref[h] for h in range(H)]
        c = [params_ref[H + h] for h in range(H)]
        b2 = params_ref[2 * H]

        def strip(s, carry):
            r0 = pl.multiple_of(s * strip_rows, strip_rows)
            x = x_ref[pl.ds(r0, strip_rows), :]
            acc = None
            # Unrolled VPU chain: 4 ops / hidden unit (mul, add, max|min, acc-add).
            for h in range(H):
                z = x * a[h] + c[h]
                t = jnp.maximum(z, 0.0) if signs[h] else jnp.minimum(z, 0.0)
                acc = t if acc is None else acc + t
            o_ref[pl.ds(r0, strip_rows), :] = (acc + b2).astype(o_ref.dtype)
            return carry

        lax.fori_loop(0, n_strips, strip, 0, unroll=(n_strips <= 32))

    return kernel


def regressionet_forward(x, w1, b1, w2, b2, *, max_tile_rows=1024, max_strip_rows=64):
    """Forward pass of RegressioNet: relu(x @ w1 + b1) @ w2 + b2.

    x: (N,) or (N, 1) float32.  Returns (N, 1) float32.
    w1: (1, HIDDEN_DIM), b1: (HIDDEN_DIM,), w2: (HIDDEN_DIM, 1), b2: (1,).
    NOTE: the kernel is specialized on sign(w2) at trace time, so call with concrete params.
    """
    x_flat = jnp.asarray(x, jnp.float32).reshape(-1)
    n = x_flat.shape[0]
    rows = pl.cdiv(n, LANES)

    # Fold layer 2 into layer 1:  out = b2 + sum_h [max|min](a_h*x + c_h, 0).
    w1f = jnp.asarray(w1, jnp.float32).reshape(-1)
    b1f = jnp.asarray(b1, jnp.float32).reshape(-1)
    w2f = jnp.asarray(w2, jnp.float32).reshape(-1)
    b2f = jnp.asarray(b2, jnp.float32).reshape(-1)
    params = jnp.concatenate([w2f * w1f, w2f * b1f, b2f])
    signs = tuple(bool(s) for s in (w2f >= 0.0))  # static at trace time (concrete params)

    # Exact-fit tiling: even number of grid steps (>=2) so both v7x TCs get >=1 pipelined
    # step each; tile rows rounded up only to the 8-row sublane granule.
    if rows <= 8:
        n_steps = 1
    else:
        n_steps = max(2, pl.cdiv(rows, max_tile_rows))
        n_steps += n_steps % 2
    tr = ((pl.cdiv(rows, n_steps) + 7) // 8) * 8
    rows_padded = n_steps * tr
    n_padded = rows_padded * LANES

    # Strip size: largest multiple of 8 (<= max_strip_rows) that divides the tile rows.
    strip_rows = 8
    for cand in range(min(tr, max_strip_rows), 7, -8):
        if tr % cand == 0:
            strip_rows = cand
            break
    n_strips = tr // strip_rows

    # Lane-dense (rows, 128) view; pad only the (tiny) tail when needed.
    if n_padded != n:
        x2d = jnp.pad(x_flat, (0, n_padded - n)).reshape(rows_padded, LANES)
    else:
        x2d = x_flat.reshape(rows_padded, LANES)

    out = pl.pallas_call(
        _make_kernel(signs, strip_rows, n_strips),
        out_shape=jax.ShapeDtypeStruct((rows_padded, LANES), jnp.float32),
        grid_spec=pltpu.PrefetchScalarGridSpec(
            num_scalar_prefetch=1,
            grid=(n_steps,),
            in_specs=[pl.BlockSpec((tr, LANES), lambda i, p: (i, 0))],
            out_specs=pl.BlockSpec((tr, LANES), lambda i, p: (i, 0)),
        ),
        compiler_params=pltpu.CompilerParams(
            dimension_semantics=("parallel",),
        ),
    )(params, x2d)

    out_flat = out.reshape(-1)
    if n_padded != n:
        out_flat = out_flat[:n]
    return out_flat.reshape(n, 1)


def init_params(key):
    """Deterministic init mirroring nn.Linear's U(-1/sqrt(fan_in), 1/sqrt(fan_in))."""
    k1, k2, k3, k4 = jax.random.split(key, 4)
    bound1 = 1.0                                  # layer_1: in_features = 1
    bound2 = 1.0 / jnp.sqrt(float(HIDDEN_DIM))    # layer_2: in_features = 10
    w1 = jax.random.uniform(k1, (1, HIDDEN_DIM), jnp.float32, -bound1, bound1)
    b1 = jax.random.uniform(k2, (HIDDEN_DIM,), jnp.float32, -bound1, bound1)
    w2 = jax.random.uniform(k3, (HIDDEN_DIM, 1), jnp.float32, -bound2, bound2)
    b2 = jax.random.uniform(k4, (1,), jnp.float32, -bound2, bound2)
    return w1, b1, w2, b2


if __name__ == "__main__":
    key = jax.random.PRNGKey(0)
    k_params, k_x = jax.random.split(key)
    w1, b1, w2, b2 = init_params(k_params)

    # Small demo batch, deliberately NOT a multiple of 128 or of the tile, to exercise
    # the exact-fit tiling + tail padding (rows=40 -> 2 grid steps of 24 rows each).
    N = 5000
    x = jax.random.uniform(k_x, (N, 1), jnp.float32)
    out = jax.block_until_ready(regressionet_forward(x, w1, b1, w2, b2))

    # Pure-JAX reference: relu(x @ W1 + b1) @ W2 + b2
    ref = jnp.maximum(x @ w1 + b1, 0.0) @ w2 + b2
    assert out.shape == (N, 1)
    assert jnp.allclose(out, ref, atol=2e-5, rtol=1e-5), "mismatch vs reference"

    # Tiny batch exercises the single-step / single-strip path.
    N2 = 100
    x2 = jax.random.uniform(k_x, (N2, 1), jnp.float32)
    out2 = jax.block_until_ready(regressionet_forward(x2, w1, b1, w2, b2))
    ref2 = jnp.maximum(x2 @ w1 + b1, 0.0) @ w2 + b2
    assert out2.shape == (N2, 1)
    assert jnp.allclose(out2, ref2, atol=2e-5, rtol=1e-5), "mismatch vs reference (tiny batch)"

    print("KERNEL_OK")
</pallas_src>

<mosaic_0001>
module attributes {stable_mosaic.version = 11 : i64} {
  func.func @kernel(%arg0: i32, %arg1: memref<21xf32, #tpu.memory_space<smem>>, %arg2: memref<24x128xf32, #tpu.memory_space<vmem>>, %arg3: memref<24x128xf32, #tpu.memory_space<vmem>>) attributes {dimension_semantics = [#tpu.dimension_semantics<parallel>], iteration_bounds = array<i64: 2>, scalar_prefetch = 1 : i64, scratch_operands = 0 : i64, tpu.core_type = #tpu.core_type<tc>, window_params = [{transform_indices = @transform_0, window_bounds = array<i64: 24, 128>}, {transform_indices = @transform_1, window_bounds = array<i64: 24, 128>}]} {
    %c0 = arith.constant 0 : index
    %0 = memref.load %arg1[%c0] : memref<21xf32, #tpu.memory_space<smem>>
    %c1 = arith.constant 1 : index
    %1 = memref.load %arg1[%c1] : memref<21xf32, #tpu.memory_space<smem>>
    %c2 = arith.constant 2 : index
    %2 = memref.load %arg1[%c2] : memref<21xf32, #tpu.memory_space<smem>>
    %c3 = arith.constant 3 : index
    %3 = memref.load %arg1[%c3] : memref<21xf32, #tpu.memory_space<smem>>
    %c4 = arith.constant 4 : index
    %4 = memref.load %arg1[%c4] : memref<21xf32, #tpu.memory_space<smem>>
    %c5 = arith.constant 5 : index
    %5 = memref.load %arg1[%c5] : memref<21xf32, #tpu.memory_space<smem>>
    %c6 = arith.constant 6 : index
    %6 = memref.load %arg1[%c6] : memref<21xf32, #tpu.memory_space<smem>>
    %c7 = arith.constant 7 : index
    %7 = memref.load %arg1[%c7] : memref<21xf32, #tpu.memory_space<smem>>
    %c8 = arith.constant 8 : index
    %8 = memref.load %arg1[%c8] : memref<21xf32, #tpu.memory_space<smem>>
    %c9 = arith.constant 9 : index
    %9 = memref.load %arg1[%c9] : memref<21xf32, #tpu.memory_space<smem>>
    %c10 = arith.constant 10 : index
    %10 = memref.load %arg1[%c10] : memref<21xf32, #tpu.memory_space<smem>>
    %c11 = arith.constant 11 : index
    %11 = memref.load %arg1[%c11] : memref<21xf32, #tpu.memory_space<smem>>
    %c12 = arith.constant 12 : index
    %12 = memref.load %arg1[%c12] : memref<21xf32, #tpu.memory_space<smem>>
    %c13 = arith.constant 13 : index
    %13 = memref.load %arg1[%c13] : memref<21xf32, #tpu.memory_space<smem>>
    %c14 = arith.constant 14 : index
    %14 = memref.load %arg1[%c14] : memref<21xf32, #tpu.memory_space<smem>>
    %c15 = arith.constant 15 : index
    %15 = memref.load %arg1[%c15] : memref<21xf32, #tpu.memory_space<smem>>
    %c16 = arith.constant 16 : index
    %16 = memref.load %arg1[%c16] : memref<21xf32, #tpu.memory_space<smem>>
    %c17 = arith.constant 17 : index
    %17 = memref.load %arg1[%c17] : memref<21xf32, #tpu.memory_space<smem>>
    %c18 = arith.constant 18 : index
    %18 = memref.load %arg1[%c18] : memref<21xf32, #tpu.memory_space<smem>>
    %c19 = arith.constant 19 : index
    %19 = memref.load %arg1[%c19] : memref<21xf32, #tpu.memory_space<smem>>
    %c20 = arith.constant 20 : index
    %20 = memref.load %arg1[%c20] : memref<21xf32, #tpu.memory_space<smem>>
    %c0_i32 = arith.constant 0 : i32
    %c24_i32 = arith.constant 24 : i32
    %21 = arith.muli %c0_i32, %c24_i32 : i32
    %22 = tpu.assume_multiple %21, 24 : i32
    %23 = arith.index_cast %22 : i32 to index
    %c0_0 = arith.constant 0 : index
    %24 = vector.load %arg2[%23, %c0_0] : memref<24x128xf32, #tpu.memory_space<vmem>>, vector<24x128xf32>
    %25 = vector.broadcast %0 : f32 to vector<24x128xf32>
    %26 = arith.mulf %24, %25 : vector<24x128xf32>
    %27 = vector.broadcast %10 : f32 to vector<24x128xf32>
    %28 = arith.addf %26, %27 : vector<24x128xf32>
    %cst = arith.constant 0.000000e+00 : f32
    %29 = vector.broadcast %cst : f32 to vector<24x128xf32>
    %30 = arith.minimumf %28, %29 : vector<24x128xf32>
    %31 = vector.broadcast %1 : f32 to vector<24x128xf32>
    %32 = arith.mulf %24, %31 : vector<24x128xf32>
    %33 = vector.broadcast %11 : f32 to vector<24x128xf32>
    %34 = arith.addf %32, %33 : vector<24x128xf32>
    %cst_1 = arith.constant 0.000000e+00 : f32
    %35 = vector.broadcast %cst_1 : f32 to vector<24x128xf32>
    %36 = arith.maximumf %34, %35 : vector<24x128xf32>
    %37 = arith.addf %30, %36 : vector<24x128xf32>
    %38 = vector.broadcast %2 : f32 to vector<24x128xf32>
    %39 = arith.mulf %24, %38 : vector<24x128xf32>
    %40 = vector.broadcast %12 : f32 to vector<24x128xf32>
    %41 = arith.addf %39, %40 : vector<24x128xf32>
    %cst_2 = arith.constant 0.000000e+00 : f32
    %42 = vector.broadcast %cst_2 : f32 to vector<24x128xf32>
    %43 = arith.minimumf %41, %42 : vector<24x128xf32>
    %44 = arith.addf %37, %43 : vector<24x128xf32>
    %45 = vector.broadcast %3 : f32 to vector<24x128xf32>
    %46 = arith.mulf %24, %45 : vector<24x128xf32>
    %47 = vector.broadcast %13 : f32 to vector<24x128xf32>
    %48 = arith.addf %46, %47 : vector<24x128xf32>
    %cst_3 = arith.constant 0.000000e+00 : f32
    %49 = vector.broadcast %cst_3 : f32 to vector<24x128xf32>
    %50 = arith.minimumf %48, %49 : vector<24x128xf32>
    %51 = arith.addf %44, %50 : vector<24x128xf32>
    %52 = vector.broadcast %4 : f32 to vector<24x128xf32>
    %53 = arith.mulf %24, %52 : vector<24x128xf32>
    %54 = vector.broadcast %14 : f32 to vector<24x128xf32>
    %55 = arith.addf %53, %54 : vector<24x128xf32>
    %cst_4 = arith.constant 0.000000e+00 : f32
    %56 = vector.broadcast %cst_4 : f32 to vector<24x128xf32>
    %57 = arith.maximumf %55, %56 : vector<24x128xf32>
    %58 = arith.addf %51, %57 : vector<24x128xf32>
    %59 = vector.broadcast %5 : f32 to vector<24x128xf32>
    %60 = arith.mulf %24, %59 : vector<24x128xf32>
    %61 = vector.broadcast %15 : f32 to vector<24x128xf32>
    %62 = arith.addf %60, %61 : vector<24x128xf32>
    %cst_5 = arith.constant 0.000000e+00 : f32
    %63 = vector.broadcast %cst_5 : f32 to vector<24x128xf32>
    %64 = arith.maximumf %62, %63 : vector<24x128xf32>
    %65 = arith.addf %58, %64 : vector<24x128xf32>
    %66 = vector.broadcast %6 : f32 to vector<24x128xf32>
    %67 = arith.mulf %24, %66 : vector<24x128xf32>
    %68 = vector.broadcast %16 : f32 to vector<24x128xf32>
    %69 = arith.addf %67, %68 : vector<24x128xf32>
    %cst_6 = arith.constant 0.000000e+00 : f32
    %70 = vector.broadcast %cst_6 : f32 to vector<24x128xf32>
    %71 = arith.maximumf %69, %70 : vector<24x128xf32>
    %72 = arith.addf %65, %71 : vector<24x128xf32>
    %73 = vector.broadcast %7 : f32 to vector<24x128xf32>
    %74 = arith.mulf %24, %73 : vector<24x128xf32>
    %75 = vector.broadcast %17 : f32 to vector<24x128xf32>
    %76 = arith.addf %74, %75 : vector<24x128xf32>
    %cst_7 = arith.constant 0.000000e+00 : f32
    %77 = vector.broadcast %cst_7 : f32 to vector<24x128xf32>
    %78 = arith.maximumf %76, %77 : vector<24x128xf32>
    %79 = arith.addf %72, %78 : vector<24x128xf32>
    %80 = vector.broadcast %8 : f32 to vector<24x128xf32>
    %81 = arith.mulf %24, %80 : vector<24x128xf32>
    %82 = vector.broadcast %18 : f32 to vector<24x128xf32>
    %83 = arith.addf %81, %82 : vector<24x128xf32>
    %cst_8 = arith.constant 0.000000e+00 : f32
    %84 = vector.broadcast %cst_8 : f32 to vector<24x128xf32>
    %85 = arith.minimumf %83, %84 : vector<24x128xf32>
    %86 = arith.addf %79, %85 : vector<24x128xf32>
    %87 = vector.broadcast %9 : f32 to vector<24x128xf32>
    %88 = arith.mulf %24, %87 : vector<24x128xf32>
    %89 = vector.broadcast %19 : f32 to vector<24x128xf32>
    %90 = arith.addf %88, %89 : vector<24x128xf32>
    %cst_9 = arith.constant 0.000000e+00 : f32
    %91 = vector.broadcast %cst_9 : f32 to vector<24x128xf32>
    %92 = arith.maximumf %90, %91 : vector<24x128xf32>
    %93 = arith.addf %86, %92 : vector<24x128xf32>
    %94 = vector.broadcast %20 : f32 to vector<24x128xf32>
    %95 = arith.addf %93, %94 : vector<24x128xf32>
    %96 = arith.index_cast %22 : i32 to index
    %c0_10 = arith.constant 0 : index
    %97 = vector.load %arg3[%96, %c0_10] : memref<24x128xf32, #tpu.memory_space<vmem>>, vector<24x128xf32>
    tpu.vector_store %arg3[%96, %c0_10], %95 {strides = array<i32>} : memref<24x128xf32, #tpu.memory_space<vmem>>, vector<24x128xf32>,
    %c1_i32 = arith.constant 1 : i32
    return
  }
  func.func @transform_0(%arg0: i32, %arg1: memref<21xf32, #tpu.memory_space<smem>>) -> (i32, i32) {
    %c0_i32 = arith.constant 0 : i32
    %c0_i32_0 = arith.constant 0 : i32
    return %arg0, %c0_i32 : i32, i32
  }
  func.func @transform_1(%arg0: i32, %arg1: memref<21xf32, #tpu.memory_space<smem>>) -> (i32, i32) {
    %c0_i32 = arith.constant 0 : i32
    %c0_i32_0 = arith.constant 0 : i32
    return %arg0, %c0_i32 : i32, i32
  }
}

</mosaic_0001>

<llo_original>
// kernel: tpu_custom_call.1
$region0: #{tpu_custom_call.1}
  #allocation0 [shape = 'u32[]', space=smem, size = 0x4, offset = 0x4, fixed_abs, tag = 'smem constant byte address 0x4 - core index']
  #allocation1 [shape = 'u32[144,128]{1,0:T(1,128)}', space=vmem, size = 0x12000, scoped, tag = 'internal scratch']
  #allocation2 [shape = 's32[1]{0}', space=sflag, size = 0x4, scoped, tag = 'scoped memory for tpu_custom_call.1']
  #allocation3 [shape = 'u8[512]{0}', space=smem, size = 0x200, scoped, tag = 'prefetched SMEM operand 0']
  %s0 = inlined_call_operand.hbm [shape: f32[21], index: 0, kind: input, shape index: {}]
  %s1 = inlined_call_operand.hbm [shape: f32[48,128], index: 1, kind: input, shape index: {}]
  %s2 = inlined_call_operand.hbm [shape: f32[48,128], index: 2, kind: output, shape index: {}]
  %s3 = sld [smem:[#allocation0]]
  $region41: #{tpu_custom_call.1} parent=0
    _
  %s5 = ssub.s32 1, %s3
  %s6 = scalar_select 0, %s5, %s3
  %8 = dma.hbm_to_smem %s0, 16, [#allocation3], [#allocation2]
  %9 = dma.done [#allocation2], 16
  %10 = sfence
  $region1: #{tpu_custom_call.1} parent=0
    #allocation4 [shape = 'u8[24576]{0}', space=vmem, size = 0x6000, scoped, tag = 'input window, operand 1']
    #allocation5 [shape = 's32[2]{0}', space=sflag, size = 0x8, scoped, tag = 'scoped memory for tpu_custom_call.1']
    #allocation6 [shape = 's32[2]{0}', space=sflag, size = 0x8, scoped, tag = 'scoped memory for tpu_custom_call.1']
    #allocation7 [shape = 'u8[24576]{0}', space=vmem, size = 0x6000, scoped, tag = 'output window, operand 0']
    %11 = vsyncpa [#allocation5], 0
    %s12 = scalar_lea.sflag [#allocation5], 1
    %13 = vsyncpa %s12, 0
    %14 = vsyncpa [#allocation6], 0
    %s15 = scalar_lea.sflag [#allocation6], 1
    %16 = vsyncpa %s15, 0
    loop: start=0, step=1, limit=4
    $region2: #{tpu_custom_call.1} parent=1 // loop_pre_header
      _
    $region3: #{tpu_custom_call.1} parent=1 // loop_header
      %s18 = sphi 0, %s22
      %p19 = scmp.ge.s32.totalorder %s18, 4
      %s28 = sphi 0, %s30
      %s31 = sphi 0, %s28
      %s32 = sphi 0, %s31
      %s48 = sphi 0, %s32
      %s54 = sphi 0, %s56
      %s57 = sphi 0, %s54
      %s58 = sphi 0, %s57
      %s74 = sphi 0, %s58
    $region4: #{tpu_custom_call.1} parent=1 // loop_header_branch
      %21 = sbr.rel (%p19) target = $region8
    $region5: #{tpu_custom_call.1} parent=1 // loop_body
      %s23 = ssub.s32 %s18, 1
      %s24 = ssub.s32 %s18, 2
      %s25 = sadd.s32 %s18, 1
      %s26 = ssub.s32 %s18, %s25
      %p27 = scmp.eq.s32.totalorder %s26, 0
      %s29 = sadd.s32 %s28, 1
      %s30 = scalar_select %p27, %s28, %s29
      %p33 = pneg %p27
      %p34 = scmp.eq.s32.totalorder %s18, 1
      %p35 = por %p33, %p34
      %p36 = scmp.ne.s32.totalorder %s28, %s31
      %p37 = scmp.eq.s32.totalorder %s18, 0
      %p38 = por %p36, %p37
      %p39 = scmp.ne.s32.totalorder %s28, %s31
      %p40 = scmp.eq.s32.totalorder %s23, 1
      %p41 = por %p39, %p40
      %p42 = scmp.ne.s32.totalorder %s31, %s32
      %p43 = scmp.eq.s32.totalorder %s23, 0
      %p44 = por %p42, %p43
      %p45 = scmp.ne.s32.totalorder %s31, %s32
      %p46 = scmp.eq.s32.totalorder %s24, 1
      %p47 = por %p45, %p46
      %p49 = scmp.ne.s32.totalorder %s32, %s48
      %p50 = scmp.eq.s32.totalorder %s24, 0
      %p51 = por %p49, %p50
      %s52 = ssub.s32 %s18, %s25
      %p53 = scmp.eq.s32.totalorder %s52, 0
      %s55 = sadd.s32 %s54, 1
      %s56 = scalar_select %p53, %s54, %s55
      %p59 = pneg %p53
      %p60 = scmp.eq.s32.totalorder %s18, 1
      %p61 = por %p59, %p60
      %p62 = scmp.ne.s32.totalorder %s54, %s57
      %p63 = scmp.eq.s32.totalorder %s18, 0
      %p64 = por %p62, %p63
      %p65 = scmp.ne.s32.totalorder %s54, %s57
      %p66 = scmp.eq.s32.totalorder %s23, 1
      %p67 = por %p65, %p66
      %p68 = scmp.ne.s32.totalorder %s57, %s58
      %p69 = scmp.eq.s32.totalorder %s23, 0
      %p70 = por %p68, %p69
      %p71 = scmp.ne.s32.totalorder %s57, %s58
      %p72 = scmp.eq.s32.totalorder %s24, 1
      %p73 = por %p71, %p72
      %p75 = scmp.ne.s32.totalorder %s58, %s74
      %p76 = scmp.eq.s32.totalorder %s24, 0
      %p77 = por %p75, %p76
      %p78 = scmp.le.s32.totalorder 1, %s18
      %p79 = scmp.lt.s32.totalorder %s18, 3
      %p80 = pnand %p78, %p79
      %p81 = pneg %p80
      // Predicated region
      $region9: #{tpu_custom_call.1} parent=5 // pred_check
        _
      $region10: #{tpu_custom_call.1} parent=5 // pred_check_branch
        %83 = sbr.rel (%p80) target = $region12
      $region11: #{tpu_custom_call.1} parent=5 // pred_region
        %s84 = ssub.s32 %s18, 1
      $region12: #{tpu_custom_call.1} parent=5 // pred_fallthru
        _
      %p85 = scmp.lt.s32.totalorder %s18, 2
      // Predicated region
      $region13: #{tpu_custom_call.1} parent=5 // pred_check
        %p86 = pneg %p85
      $region14: #{tpu_custom_call.1} parent=5 // pred_check_branch
        %88 = sbr.rel (%p86) target = $region16
      $region15: #{tpu_custom_call.1} parent=5 // pred_region
        // Predicated region
        $region17: #{tpu_custom_call.1} parent=15 // pred_check
          %p89 = pneg %p38
        $region18: #{tpu_custom_call.1} parent=15 // pred_check_branch
          %91 = sbr.rel (%p89) target = $region20
        $region19: #{tpu_custom_call.1} parent=15 // pred_region
          %s92 = sand.u32 %s28, 1
          %s93 = scalar_lea.sflag [#allocation5], %s92
          %s94 = sand.u32 %s28, 1
          %s95 = smul.addr %s94, 24
          %s96 = scalar_lea.vmem [#allocation4], %s95
          %s97 = smul.u32 3, %s18
          %s99 = ssub.s32 384, 384
          %100 = vsyncadd %s93, %s99
          %s101 = smul.addr %s97, 128
          %s102 = scalar_lea.hbm %s1, %s101
          %s103 = sshll.u32 %s96, 4
          %s104 = int_to_ptr.vmem [resolvable:$true] %s103
          %109 = dma.hbm_to_vmem [thread:$0]  %s102, 384, %s104, %s93, 128, 128, 8
        $region20: #{tpu_custom_call.1} parent=15 // pred_fallthru
          _
      $region16: #{tpu_custom_call.1} parent=5 // pred_fallthru
        _
      %p110 = scmp.le.s32.totalorder 1, %s18
      %p111 = scmp.lt.s32.totalorder %s18, 3
      %p112 = pnand %p110, %p111
      %p113 = pneg %p112
      // Predicated region
      $region21: #{tpu_custom_call.1} parent=5 // pred_check
        _
      $region22: #{tpu_custom_call.1} parent=5 // pred_check_branch
        %115 = sbr.rel (%p112) target = $region24
      $region23: #{tpu_custom_call.1} parent=5 // pred_region
        %s116 = ssub.s32 %s18, 1
        %s117 = sand.u32 %s31, 1
        %s118 = scalar_lea.sflag [#allocation5], %s117
        %s119 = sand.u32 %s31, 1
        %s120 = smul.addr %s119, 24
        %s121 = scalar_lea.vmem [#allocation4], %s120
        // Predicated region
        $region25: #{tpu_custom_call.1} parent=23 // pred_check
          %p122 = pneg %p44
        $region26: #{tpu_custom_call.1} parent=23 // pred_check_branch
          %124 = sbr.rel (%p122) target = $region28
        $region27: #{tpu_custom_call.1} parent=23 // pred_region
          %125 = dma.done %s118, 384
        $region28: #{tpu_custom_call.1} parent=23 // pred_fallthru
          _
        %s126 = sand.u32 %s31, 1
        %s127 = scalar_lea.sflag [#allocation5], %s126
        %s128 = sand.u32 %s31, 1
        %s129 = smul.addr %s128, 24
        %s130 = scalar_lea.vmem [#allocation4], %s129
        %p131 = pneg %p44
        %p132 = pneg %p41
        %p133 = pneg %p70
        %p134 = pneg %p67
        %s135 = sand.u32 %s57, 1
        %s136 = scalar_lea.sflag [#allocation6], %s135
        %s137 = sand.u32 %s57, 1
        %s138 = smul.addr %s137, 24
        %s139 = scalar_lea.vmem [#allocation7], %s138
        %s140 = smul.u32 3, %s23
        %s141 = smul.u32 3, %s23
        %s142 = sld [smem:[#allocation3]]
        %s143 = sld [smem:[#allocation3 + $0x1]]
        %s144 = sld [smem:[#allocation3 + $0x2]]
        %s145 = sld [smem:[#allocation3 + $0x3]]
        %s146 = sld [smem:[#allocation3 + $0x4]]
        %s147 = sld [smem:[#allocation3 + $0x5]]
        %s148 = sld [smem:[#allocation3 + $0x6]]
        %s149 = sld [smem:[#allocation3 + $0x7]]
        %s150 = sld [smem:[#allocation3 + $0x8]]
        %s151 = sld [smem:[#allocation3 + $0x9]]
        %s152 = sld [smem:[#allocation3 + $0xa]]
        %s153 = sld [smem:[#allocation3 + $0xb]]
        %s154 = sld [smem:[#allocation3 + $0xc]]
        %s155 = sld [smem:[#allocation3 + $0xd]]
        %s156 = sld [smem:[#allocation3 + $0xe]]
        %s157 = sld [smem:[#allocation3 + $0xf]]
        %s158 = sld [smem:[#allocation3 + $0x10]]
        %s159 = sld [smem:[#allocation3 + $0x11]]
        %s160 = sld [smem:[#allocation3 + $0x12]]
        %s161 = sld [smem:[#allocation3 + $0x13]]
        %s162 = sld [smem:[#allocation3 + $0x14]]
        %v163 = vld [vmem:[%s121] sm:$0xff]
        %v164 = vld [vmem:[%s121 + $0x8] sm:$0xff]
        %v165 = vld [vmem:[%s121 + $0x10] sm:$0xff]
        %v166 = vstv %s142
        %v167 = vmul.f32 %v163, %v166
        %v168 = vmul.f32 %v164, %v166
        %v169 = vmul.f32 %v165, %v166
        %v170 = vstv %s152
        %v171 = vadd.f32 %v167, %v170
        %v172 = vadd.f32 %v168, %v170
        %v173 = vadd.f32 %v169, %v170
        %v174 = vmin.f32 %v171, 0.0
        %v175 = vmin.f32 %v172, 0.0
        %v176 = vmin.f32 %v173, 0.0
        %v177 = vstv %s143
        %v178 = vmul.f32 %v163, %v177
        %v179 = vmul.f32 %v164, %v177
        %v180 = vmul.f32 %v165, %v177
        %v181 = vstv %s153
        %v182 = vadd.f32 %v178, %v181
        %v183 = vadd.f32 %v179, %v181
        %v184 = vadd.f32 %v180, %v181
        %v185 = vmax.f32 %v182, 0.0
        %v186 = vmax.f32 %v183, 0.0
        %v187 = vmax.f32 %v184, 0.0
        %v188 = vadd.f32 %v174, %v185
        %v189 = vadd.f32 %v175, %v186
        %v190 = vadd.f32 %v176, %v187
        %v191 = vstv %s144
        %v192 = vmul.f32 %v163, %v191
        %v193 = vmul.f32 %v164, %v191
        %v194 = vmul.f32 %v165, %v191
        %v195 = vstv %s154
        %v196 = vadd.f32 %v192, %v195
        %v197 = vadd.f32 %v193, %v195
        %v198 = vadd.f32 %v194, %v195
        %v199 = vmin.f32 %v196, 0.0
        %v200 = vmin.f32 %v197, 0.0
        %v201 = vmin.f32 %v198, 0.0
        %v202 = vadd.f32 %v188, %v199
        %v203 = vadd.f32 %v189, %v200
        %v204 = vadd.f32 %v190, %v201
        %v205 = vstv %s145
        %v206 = vmul.f32 %v163, %v205
        %v207 = vmul.f32 %v164, %v205
        %v208 = vmul.f32 %v165, %v205
        %v209 = vstv %s155
        %v210 = vadd.f32 %v206, %v209
        %v211 = vadd.f32 %v207, %v209
        %v212 = vadd.f32 %v208, %v209
        %v213 = vmin.f32 %v210, 0.0
        %v214 = vmin.f32 %v211, 0.0
        %v215 = vmin.f32 %v212, 0.0
        %v216 = vadd.f32 %v202, %v213
        %v217 = vadd.f32 %v203, %v214
        %v218 = vadd.f32 %v204, %v215
        %v219 = vstv %s146
        %v220 = vmul.f32 %v163, %v219
        %v221 = vmul.f32 %v164, %v219
        %v222 = vmul.f32 %v165, %v219
        %v223 = vstv %s156
        %v224 = vadd.f32 %v220, %v223
        %v225 = vadd.f32 %v221, %v223
        %v226 = vadd.f32 %v222, %v223
        %v227 = vmax.f32 %v224, 0.0
        %v228 = vmax.f32 %v225, 0.0
        %v229 = vmax.f32 %v226, 0.0
        %v230 = vadd.f32 %v216, %v227
        %v231 = vadd.f32 %v217, %v228
        %v232 = vadd.f32 %v218, %v229
        %v233 = vstv %s147
        %v234 = vmul.f32 %v163, %v233
        %v235 = vmul.f32 %v164, %v233
        %v236 = vmul.f32 %v165, %v233
        %v237 = vstv %s157
        %v238 = vadd.f32 %v234, %v237
        %v239 = vadd.f32 %v235, %v237
        %v240 = vadd.f32 %v236, %v237
        %v241 = vmax.f32 %v238, 0.0
        %v242 = vmax.f32 %v239, 0.0
        %v243 = vmax.f32 %v240, 0.0
        %v244 = vadd.f32 %v230, %v241
        %v245 = vadd.f32 %v231, %v242
        %v246 = vadd.f32 %v232, %v243
        %v247 = vstv %s148
        %v248 = vmul.f32 %v163, %v247
        %v249 = vmul.f32 %v164, %v247
        %v250 = vmul.f32 %v165, %v247
        %v251 = vstv %s158
        %v252 = vadd.f32 %v248, %v251
        %v253 = vadd.f32 %v249, %v251
        %v254 = vadd.f32 %v250, %v251
        %v255 = vmax.f32 %v252, 0.0
        %v256 = vmax.f32 %v253, 0.0
        %v257 = vmax.f32 %v254, 0.0
        %v258 = vadd.f32 %v244, %v255
        %v259 = vadd.f32 %v245, %v256
        %v260 = vadd.f32 %v246, %v257
        %v261 = vstv %s149
        %v262 = vmul.f32 %v163, %v261
        %v263 = vmul.f32 %v164, %v261
        %v264 = vmul.f32 %v165, %v261
        %v265 = vstv %s159
        %v266 = vadd.f32 %v262, %v265
        %v267 = vadd.f32 %v263, %v265
        %v268 = vadd.f32 %v264, %v265
        %v269 = vmax.f32 %v266, 0.0
        %v270 = vmax.f32 %v267, 0.0
        %v271 = vmax.f32 %v268, 0.0
        %v272 = vadd.f32 %v258, %v269
        %v273 = vadd.f32 %v259, %v270
        %v274 = vadd.f32 %v260, %v271
        %v275 = vstv %s150
        %v276 = vmul.f32 %v163, %v275
        %v277 = vmul.f32 %v164, %v275
        %v278 = vmul.f32 %v165, %v275
        %v279 = vstv %s160
        %v280 = vadd.f32 %v276, %v279
        %v281 = vadd.f32 %v277, %v279
        %v282 = vadd.f32 %v278, %v279
        %v283 = vmin.f32 %v280, 0.0
        %v284 = vmin.f32 %v281, 0.0
        %v285 = vmin.f32 %v282, 0.0
        %v286 = vadd.f32 %v272, %v283
        %v287 = vadd.f32 %v273, %v284
        %v288 = vadd.f32 %v274, %v285
        %v289 = vstv %s151
        %v290 = vmul.f32 %v163, %v289
        %v291 = vmul.f32 %v164, %v289
        %v292 = vmul.f32 %v165, %v289
        %v293 = vstv %s161
        %v294 = vadd.f32 %v290, %v293
        %v295 = vadd.f32 %v291, %v293
        %v296 = vadd.f32 %v292, %v293
        %v297 = vmax.f32 %v294, 0.0
        %v298 = vmax.f32 %v295, 0.0
        %v299 = vmax.f32 %v296, 0.0
        %v300 = vadd.f32 %v286, %v297
        %v301 = vadd.f32 %v287, %v298
        %v302 = vadd.f32 %v288, %v299
        %v303 = vstv %s162
        %v304 = vadd.f32 %v300, %v303
        %v305 = vadd.f32 %v301, %v303
        %v306 = vadd.f32 %v302, %v303
        %307 = vst [vmem:[%s139] sm:$0xff] %v304
        %308 = vst [vmem:[%s139 + $0x8] sm:$0xff] %v305
        %309 = vst [vmem:[%s139 + $0x10] sm:$0xff] %v306
        %s310 = sand.u32 %s57, 1
        %s311 = scalar_lea.sflag [#allocation6], %s310
        %s312 = sand.u32 %s57, 1
        %s313 = smul.addr %s312, 24
        %s314 = scalar_lea.vmem [#allocation7], %s313
        // Predicated region
        $region29: #{tpu_custom_call.1} parent=23 // pred_check
          %p315 = pneg %p67
        $region30: #{tpu_custom_call.1} parent=23 // pred_check_branch
          %317 = sbr.rel (%p315) target = $region32
        $region31: #{tpu_custom_call.1} parent=23 // pred_region
          %s318 = smul.u32 3, %s23
          %s320 = ssub.s32 384, 384
          %321 = vsyncadd %s311, %s320
          %s322 = smul.addr %s318, 128
          %s323 = scalar_lea.hbm %s2, %s322
          %s324 = sshll.u32 %s314, 4
          %s325 = int_to_ptr.vmem [resolvable:$true] %s324
          %330 = dma.vmem_to_hbm [thread:$0]  %s325, 384, %s323, %s311, 128, 128, 8
        $region32: #{tpu_custom_call.1} parent=23 // pred_fallthru
          _
      $region24: #{tpu_custom_call.1} parent=5 // pred_fallthru
        _
      %p331 = scmp.le.s32.totalorder 2, %s18
      // Predicated region
      $region33: #{tpu_custom_call.1} parent=5 // pred_check
        %p332 = pneg %p331
      $region34: #{tpu_custom_call.1} parent=5 // pred_check_branch
        %334 = sbr.rel (%p332) target = $region36
      $region35: #{tpu_custom_call.1} parent=5 // pred_region
        %s335 = ssub.s32 %s18, 2
        // Predicated region
        $region37: #{tpu_custom_call.1} parent=35 // pred_check
          %p336 = pneg %p73
        $region38: #{tpu_custom_call.1} parent=35 // pred_check_branch
          %338 = sbr.rel (%p336) target = $region40
        $region39: #{tpu_custom_call.1} parent=35 // pred_region
          %s339 = sand.u32 %s58, 1
          %s340 = scalar_lea.sflag [#allocation6], %s339
          %s341 = sand.u32 %s58, 1
          %s342 = smul.addr %s341, 24
          %s343 = scalar_lea.vmem [#allocation7], %s342
          %344 = dma.done %s340, 384
        $region40: #{tpu_custom_call.1} parent=35 // pred_fallthru
          _
      $region36: #{tpu_custom_call.1} parent=5 // pred_fallthru
        _
    $region6: #{tpu_custom_call.1} parent=1 // loop_footer
      %s22 = sadd.s32 1, %s18
    $region7: #{tpu_custom_call.1} parent=1 // loop_footer_branch
      %17 = sbr.rel target = $region3
    $region8: #{tpu_custom_call.1} parent=1 // loop_exit
      _
    %345 = vsyncpa [#allocation5], 1
    %s346 = scalar_lea.sflag [#allocation5], 1
    %347 = vsyncpa %s346, 1
    %348 = vsyncpa [#allocation6], 1
    %s349 = scalar_lea.sflag [#allocation6], 1
    %350 = vsyncpa %s349, 1

</llo_original>
